<compile_context>
chip_gen: v7x
topology: tpu7x:2x2x1
jax: 0.10.0
libtpu: 0.0.40
codegen_flags: <defaults>
</compile_context>

<pallas_src>
import jax
import jax.numpy as jnp
from jax.experimental import pallas as pl
from jax.experimental.pallas import tpu as pltpu

INPUT_DIM = 50
HIDDEN_DIM = 25
OUT_DIM = 2
OUT_PAD = 8          # pad the 2-class head to a full sublane group


def _round_up(n, m):
    return ((n + m - 1) // m) * m


def mlp_kernel(x_ref, w1_ref, b1_ref, w2_ref, b2_ref, o_ref):
    # Layer 1: Linear(50 -> 25) + ReLU.  Matmul runs at w1's dtype (bf16 by
    # default -> single-pass MXU) with f32 accumulation; bias/ReLU in f32.
    x = x_ref[...].astype(w1_ref.dtype)                       # [TB, 50] (free VPU cast)
    h = jnp.dot(x, w1_ref[...], preferred_element_type=jnp.float32)
    h = jnp.maximum(h + b1_ref[...], 0.0)                     # [TB, 25] f32
    # Dropout(p=0.2) is identity in eval/inference mode (no-op).
    # Layer 2: Linear(25 -> 2) (zero-padded to 8 output columns), f32.
    y = jnp.dot(h, w2_ref[...], preferred_element_type=jnp.float32)  # [TB, 8]
    o_ref[...] = (y + b2_ref[...]).astype(o_ref.dtype)


def prepare_params(w1_pt, b1_pt, w2_pt, b2_pt, compute_dtype=jnp.bfloat16):
    """Repack PyTorch-layout params into kernel layout ONCE (hoist out of hot path).

    w1_pt: [25, 50], b1_pt: [25], w2_pt: [2, 25], b2_pt: [2]
    compute_dtype: dtype of the layer-1 MXU matmul (bf16 recommended; f32 for
                   bit-for-bit-style checks).
    """
    w1 = w1_pt.T.astype(compute_dtype)                            # [50, 25]
    b1 = b1_pt.reshape(1, HIDDEN_DIM).astype(jnp.float32)         # [1, 25]
    w2 = jnp.zeros((HIDDEN_DIM, OUT_PAD), jnp.float32)
    w2 = w2.at[:, :OUT_DIM].set(w2_pt.T.astype(jnp.float32))      # [25, 8]
    b2 = jnp.zeros((1, OUT_PAD), jnp.float32)
    b2 = b2.at[0, :OUT_DIM].set(b2_pt.astype(jnp.float32))        # [1, 8]
    return w1, b1, w2, b2


def _pick_tile(B, max_tile_rows):
    """Batch tile: snug single tile for small B, else 128-aligned tiles that
    guarantee >= 2 grid steps (TC sharding / DMA-compute overlap) up to a VMEM-
    safe cap."""
    if B < 2 * 128:
        return _round_up(max(B, 1), 8)
    tb = min(_round_up(max_tile_rows, 128), _round_up(pl.cdiv(B, 2), 128))
    return max(tb, 128)


def mlp_binary_classifier(x, params, *, max_tile_rows=8192):
    """y = relu(x @ W1^T + b1) @ W2^T + b2 (Dropout = identity in eval mode).

    x:      [B, 50]  float32 or bfloat16.  Pass bf16 ONLY if the producer already
            emits bf16 — do not cast in a wrapper (it just adds HBM traffic).
    params: output of prepare_params() (kernel-layout, precomputed once).
    returns [B, 2] float32
    """
    w1, b1, w2, b2 = params
    B, D = x.shape
    assert D == INPUT_DIM

    TB = _pick_tile(B, max_tile_rows)
    num_tiles = pl.cdiv(B, TB)
    Bp = num_tiles * TB   # padded batch; ragged last x tile reads unspecified rows
                          # (safe: rows independent, padded outputs sliced off)

    out = pl.pallas_call(
        mlp_kernel,
        out_shape=jax.ShapeDtypeStruct((Bp, OUT_PAD), jnp.float32),
        grid=(num_tiles,),
        in_specs=[
            pl.BlockSpec((TB, INPUT_DIM), lambda i: (i, 0)),          # x: streamed
            pl.BlockSpec((INPUT_DIM, HIDDEN_DIM), lambda i: (0, 0)),  # w1 resident
            pl.BlockSpec((1, HIDDEN_DIM), lambda i: (0, 0)),          # b1 resident
            pl.BlockSpec((HIDDEN_DIM, OUT_PAD), lambda i: (0, 0)),    # w2 resident
            pl.BlockSpec((1, OUT_PAD), lambda i: (0, 0)),             # b2 resident
        ],
        out_specs=pl.BlockSpec((TB, OUT_PAD), lambda i: (i, 0)),
        compiler_params=pltpu.CompilerParams(
            dimension_semantics=("parallel",),      # shard across TCs on v7x
            vmem_limit_bytes=32 * 1024 * 1024,      # big tiles fit v5e's scoped VMEM too
        ),
    )(x, w1, b1, w2, b2)

    # Drop padded classes / padded batch rows (cheap contiguous slice, no transpose).
    return out[:B, :OUT_DIM]


def init_params(key):
    """Deterministic PyTorch-Linear-like uniform fan-in init (PyTorch layout)."""
    k1, k2, k3, k4 = jax.random.split(key, 4)
    bound1 = 1.0 / jnp.sqrt(INPUT_DIM)
    bound2 = 1.0 / jnp.sqrt(HIDDEN_DIM)
    w1 = jax.random.uniform(k1, (HIDDEN_DIM, INPUT_DIM), jnp.float32, -bound1, bound1)
    b1 = jax.random.uniform(k2, (HIDDEN_DIM,), jnp.float32, -bound1, bound1)
    w2 = jax.random.uniform(k3, (OUT_DIM, HIDDEN_DIM), jnp.float32, -bound2, bound2)
    b2 = jax.random.uniform(k4, (OUT_DIM,), jnp.float32, -bound2, bound2)
    return w1, b1, w2, b2


if __name__ == "__main__":
    key = jax.random.PRNGKey(0)
    kx, kp = jax.random.split(key)
    w1_pt, b1_pt, w2_pt, b2_pt = init_params(kp)

    def ref_forward(xx):
        h = jnp.maximum(xx @ w1_pt.T + b1_pt, 0.0)
        return h @ w2_pt.T + b2_pt  # Dropout is identity in eval mode

    # Kernel-layout params prepared ONCE (hoisted out of the hot path).
    params_bf16 = prepare_params(w1_pt, b1_pt, w2_pt, b2_pt)                 # default
    params_f32 = prepare_params(w1_pt, b1_pt, w2_pt, b2_pt, jnp.float32)     # exact path

    # 1) Small-batch path (single snug tile), all-f32 compute, tight tolerance.
    B = 8
    x = jax.random.normal(kx, (B, INPUT_DIM), jnp.float32)
    out = jax.block_until_ready(mlp_binary_classifier(x, params_f32))
    assert out.shape == (B, OUT_DIM)
    assert jnp.allclose(out, ref_forward(x), atol=1e-3, rtol=1e-3)

    # 2) Multi-tile pipelined path (>= 2 grid steps, ragged last tile), bf16 layer-1.
    B2 = 300
    x2 = jax.random.normal(jax.random.PRNGKey(1), (B2, INPUT_DIM), jnp.float32)
    out2 = jax.block_until_ready(mlp_binary_classifier(x2, params_bf16))
    assert out2.shape == (B2, OUT_DIM)
    assert jnp.allclose(out2, ref_forward(x2), atol=3e-2, rtol=3e-2)

    # 3) Producer-supplied bf16 activations (halves the dominant HBM read of x).
    out3 = jax.block_until_ready(
        mlp_binary_classifier(x2.astype(jnp.bfloat16), params_bf16))
    assert out3.shape == (B2, OUT_DIM)
    assert jnp.allclose(out3, ref_forward(x2), atol=5e-2, rtol=5e-2)

    print("KERNEL_OK")
</pallas_src>

<mosaic_0001>
module attributes {stable_mosaic.version = 11 : i64} {
  func.func @mlp_kernel(%arg0: i32, %arg1: memref<8x50xf32, #tpu.memory_space<vmem>>, %arg2: memref<50x25xf32, #tpu.memory_space<vmem>>, %arg3: memref<1x25xf32, #tpu.memory_space<vmem>>, %arg4: memref<25x8xf32, #tpu.memory_space<vmem>>, %arg5: memref<1x8xf32, #tpu.memory_space<vmem>>, %arg6: memref<8x8xf32, #tpu.memory_space<vmem>>) attributes {dimension_semantics = [#tpu.dimension_semantics<parallel>], iteration_bounds = array<i64: 1>, scalar_prefetch = 0 : i64, scratch_operands = 0 : i64, tpu.core_type = #tpu.core_type<tc>, window_params = [{transform_indices = @transform_0, window_bounds = array<i64: 8, 50>}, {pipeline_mode = #tpu.pipeline_mode<synchronous>, transform_indices = @transform_1, window_bounds = array<i64: 50, 25>}, {pipeline_mode = #tpu.pipeline_mode<synchronous>, transform_indices = @transform_2, window_bounds = array<i64: 1, 25>}, {pipeline_mode = #tpu.pipeline_mode<synchronous>, transform_indices = @transform_3, window_bounds = array<i64: 25, 8>}, {pipeline_mode = #tpu.pipeline_mode<synchronous>, transform_indices = @transform_4, window_bounds = array<i64: 1, 8>}, {transform_indices = @transform_5, window_bounds = array<i64: 8, 8>}]} {
    %c0 = arith.constant 0 : index
    %c0_0 = arith.constant 0 : index
    %0 = vector.load %arg1[%c0, %c0_0] : memref<8x50xf32, #tpu.memory_space<vmem>>, vector<8x50xf32>
    %c0_1 = arith.constant 0 : index
    %c0_2 = arith.constant 0 : index
    %1 = vector.load %arg2[%c0_1, %c0_2] : memref<50x25xf32, #tpu.memory_space<vmem>>, vector<50x25xf32>
    %cst = arith.constant dense<0.000000e+00> : vector<8x25xf32>
    %2 = tpu.matmul %0, %1, %cst {dimension_numbers = #tpu.dot_dimension_numbers<[1], [0], [0], [1], [0, 0, 1, 1], [], []>} : vector<8x50xf32>, vector<50x25xf32>, vector<8x25xf32> -> vector<8x25xf32>
    %c0_3 = arith.constant 0 : index
    %c0_4 = arith.constant 0 : index
    %3 = vector.load %arg3[%c0_3, %c0_4] : memref<1x25xf32, #tpu.memory_space<vmem>>, vector<1x25xf32>
    %4 = vector.broadcast %3 : vector<1x25xf32> to vector<8x25xf32>
    %5 = arith.addf %2, %4 : vector<8x25xf32>
    %cst_5 = arith.constant 0.000000e+00 : f32
    %6 = vector.broadcast %cst_5 : f32 to vector<8x25xf32>
    %7 = arith.maximumf %5, %6 : vector<8x25xf32>
    %c0_6 = arith.constant 0 : index
    %c0_7 = arith.constant 0 : index
    %8 = vector.load %arg4[%c0_6, %c0_7] : memref<25x8xf32, #tpu.memory_space<vmem>>, vector<25x8xf32>
    %cst_8 = arith.constant dense<0.000000e+00> : vector<8x8xf32>
    %9 = tpu.matmul %7, %8, %cst_8 {dimension_numbers = #tpu.dot_dimension_numbers<[1], [0], [0], [1], [0, 0, 1, 1], [], []>} : vector<8x25xf32>, vector<25x8xf32>, vector<8x8xf32> -> vector<8x8xf32>
    %c0_9 = arith.constant 0 : index
    %c0_10 = arith.constant 0 : index
    %10 = vector.load %arg5[%c0_9, %c0_10] : memref<1x8xf32, #tpu.memory_space<vmem>>, vector<1x8xf32>
    %11 = vector.broadcast %10 : vector<1x8xf32> to vector<8x8xf32>
    %12 = arith.addf %9, %11 : vector<8x8xf32>
    %c0_11 = arith.constant 0 : index
    %c0_12 = arith.constant 0 : index
    %13 = vector.load %arg6[%c0_11, %c0_12] : memref<8x8xf32, #tpu.memory_space<vmem>>, vector<8x8xf32>
    tpu.vector_store %arg6[%c0_11, %c0_12], %12 {strides = array<i32>} : memref<8x8xf32, #tpu.memory_space<vmem>>, vector<8x8xf32>,
    return
  }
  func.func @transform_0(%arg0: i32) -> (i32, i32) {
    %c0_i32 = arith.constant 0 : i32
    %c0_i32_0 = arith.constant 0 : i32
    return %arg0, %c0_i32 : i32, i32
  }
  func.func @transform_1(%arg0: i32) -> (i32, i32) {
    %c0_i32 = arith.constant 0 : i32
    %c0_i32_0 = arith.constant 0 : i32
    %c0_i32_1 = arith.constant 0 : i32
    return %c0_i32, %c0_i32_0 : i32, i32
  }
  func.func @transform_2(%arg0: i32) -> (i32, i32) {
    %c0_i32 = arith.constant 0 : i32
    %c0_i32_0 = arith.constant 0 : i32
    %c0_i32_1 = arith.constant 0 : i32
    return %c0_i32, %c0_i32_0 : i32, i32
  }
  func.func @transform_3(%arg0: i32) -> (i32, i32) {
    %c0_i32 = arith.constant 0 : i32
    %c0_i32_0 = arith.constant 0 : i32
    %c0_i32_1 = arith.constant 0 : i32
    return %c0_i32, %c0_i32_0 : i32, i32
  }
  func.func @transform_4(%arg0: i32) -> (i32, i32) {
    %c0_i32 = arith.constant 0 : i32
    %c0_i32_0 = arith.constant 0 : i32
    %c0_i32_1 = arith.constant 0 : i32
    return %c0_i32, %c0_i32_0 : i32, i32
  }
  func.func @transform_5(%arg0: i32) -> (i32, i32) {
    %c0_i32 = arith.constant 0 : i32
    %c0_i32_0 = arith.constant 0 : i32
    return %arg0, %c0_i32 : i32, i32
  }
}

</mosaic_0001>

<llo_original>
// kernel: tpu_custom_call.1
$region0: #{tpu_custom_call.1}
  #allocation0 [shape = 'u32[]', space=smem, size = 0x4, offset = 0x4, fixed_abs, tag = 'smem constant byte address 0x4 - core index']
  #allocation1 [shape = 'u32[144,128]{1,0:T(1,128)}', space=vmem, size = 0x12000, scoped, tag = 'internal scratch']
  %s0 = inlined_call_operand.vmem [shape: f32[8,50], index: 0, kind: input, shape index: {}]
  %s1 = inlined_call_operand.vmem [shape: f32[50,25], index: 1, kind: input, shape index: {}]
  %s2 = inlined_call_operand.vmem [shape: f32[1,25], index: 2, kind: input, shape index: {}]
  %s3 = inlined_call_operand.vmem [shape: f32[25,8], index: 3, kind: input, shape index: {}]
  %s4 = inlined_call_operand.vmem [shape: f32[1,8], index: 4, kind: input, shape index: {}]
  %s5 = inlined_call_operand.hbm [shape: f32[8,8], index: 5, kind: output, shape index: {}]
  %s6 = sld [smem:[#allocation0]]
  $region30: #{tpu_custom_call.1} parent=0
    _
  %s8 = ssub.s32 1, %s6
  %s9 = scalar_select 0, %s8, %s6
  $region1: #{tpu_custom_call.1} parent=0
    #allocation2 [shape = 'u8[4096]{0}', space=vmem, size = 0x1000, scoped, tag = 'output window, operand 0, single buffered']
    #allocation3 [shape = 's32[1]{0}', space=sflag, size = 0x4, scoped, tag = 'scoped memory for tpu_custom_call.1']
    %10 = vsyncpa [#allocation3], 0
    // Predicated region
    $region2: #{tpu_custom_call.1} parent=1 // pred_check
      _
    $region3: #{tpu_custom_call.1} parent=1 // pred_check_branch
      %12 = sbr.rel (0) target = $region5
    $region4: #{tpu_custom_call.1} parent=1 // pred_region
      _
    $region5: #{tpu_custom_call.1} parent=1 // pred_fallthru
      _
    // Predicated region
    $region6: #{tpu_custom_call.1} parent=1 // pred_check
      _
    $region7: #{tpu_custom_call.1} parent=1 // pred_check_branch
      %14 = sbr.rel (0) target = $region9
    $region8: #{tpu_custom_call.1} parent=1 // pred_region
      _
    $region9: #{tpu_custom_call.1} parent=1 // pred_fallthru
      _
    // Predicated region
    $region10: #{tpu_custom_call.1} parent=1 // pred_check
      _
    $region11: #{tpu_custom_call.1} parent=1 // pred_check_branch
      %16 = sbr.rel (0) target = $region13
    $region12: #{tpu_custom_call.1} parent=1 // pred_region
      _
    $region13: #{tpu_custom_call.1} parent=1 // pred_fallthru
      _
    // Predicated region
    $region14: #{tpu_custom_call.1} parent=1 // pred_check
      _
    $region15: #{tpu_custom_call.1} parent=1 // pred_check_branch
      %18 = sbr.rel (0) target = $region17
    $region16: #{tpu_custom_call.1} parent=1 // pred_region
      _
    $region17: #{tpu_custom_call.1} parent=1 // pred_fallthru
      _
    // Predicated region
    $region18: #{tpu_custom_call.1} parent=1 // pred_check
      _
    $region19: #{tpu_custom_call.1} parent=1 // pred_check_branch
      %20 = sbr.rel (0) target = $region21
    $region20: #{tpu_custom_call.1} parent=1 // pred_region
      _
    $region21: #{tpu_custom_call.1} parent=1 // pred_fallthru
      _
    %v21 = vld [vmem:[%s0] sm:$0xff]
    %v22 = vld [vmem:[%s1] sm:$0xff]
    %v23 = vld [vmem:[%s1 + $0x8] sm:$0xff]
    %v24 = vld [vmem:[%s1 + $0x10] sm:$0xff]
    %v25 = vld [vmem:[%s1 + $0x18] sm:$0xff]
    %v26 = vld [vmem:[%s1 + $0x20] sm:$0xff]
    %v27 = vld [vmem:[%s1 + $0x28] sm:$0xff]
    %v28 = vld [vmem:[%s1 + $0x30] sm:$0x3]
    %v29 = vld [vmem:[%s2] sm:$0x1]
    %v31 = vlaneseq
    %v32 = vshrl.u32 %v31, 7
    %v33 = vsub.s32 0, %v32
    %v34 = vrot.slane %v29, %v33
    %vm36 = vcmask 408576
    %v38 = vsel %vm36, %v21, 0
    %vm40 = vcmask 1041408
    %v42 = vsel %vm40, %v28, 0
    %44 = vmatprep.subr.mxu0 0.0
    %45 = vmatpush1.msra.mxu0 %v22
    %46 = vmatprep.subr.mxu0 0.0
    %47 = vmatpush1.msra.mxu0 %v23
    %48 = vmatprep.subr.mxu0 0.0
    %49 = vmatpush1.msra.mxu0 %v24
    %50 = vmatprep.subr.mxu0 0.0
    %51 = vmatpush1.msra.mxu0 %v25
    %52 = vmatprep.subr.mxu0 0.0
    %53 = vmatpush1.msra.mxu0 %v26
    %54 = vmatprep.subr.mxu0 0.0
    %55 = vmatpush1.msra.mxu0 %v27
    %56 = vmatprep.subr.mxu0 0.0
    %57 = vmatpush1.msra.mxu0 %v42
    %58 = vmatprep.subr.mxu0 0.0
    %59 = vmatpush1.msra.mxu0 0.0
    %60 = vmatprep.subr.mxu0 0.0
    %61 = vmatpush1.msra.mxu0 0.0
    %62 = vmatprep.subr.mxu0 0.0
    %63 = vmatpush1.msra.mxu0 0.0
    %64 = vmatprep.subr.mxu0 0.0
    %65 = vmatpush1.msra.mxu0 0.0
    %66 = vmatprep.subr.mxu0 0.0
    %67 = vmatpush1.msra.mxu0 0.0
    %68 = vmatprep.subr.mxu0 0.0
    %69 = vmatpush1.msra.mxu0 0.0
    %70 = vmatprep.subr.mxu0 0.0
    %71 = vmatpush1.msra.mxu0 0.0
    %72 = vmatprep.subr.mxu0 0.0
    %73 = vmatpush1.msra.mxu0 0.0
    %74 = vmatprep.subr.mxu0 0.0
    %75 = vmatpush1.msra.mxu0 0.0
    %76 = vmatprep.subr.mxu0 0.0
    %77 = vmatpush1.msra.mxu0 0.0
    %78 = vmatprep.subr.mxu0 0.0
    %79 = vmatpush1.msra.mxu0 0.0
    %80 = vmatprep.subr.mxu0 0.0
    %81 = vmatpush1.msra.mxu0 0.0
    %82 = vmatprep.subr.mxu0 0.0
    %83 = vmatpush1.msra.mxu0 0.0
    %84 = vmatprep.subr.mxu0 0.0
    %85 = vmatpush1.msra.mxu0 0.0
    %86 = vmatprep.subr.mxu0 0.0
    %87 = vmatpush1.msra.mxu0 0.0
    %88 = vmatprep.subr.mxu0 0.0
    %89 = vmatpush1.msra.mxu0 0.0
    %90 = vmatprep.subr.mxu0 0.0
    %91 = vmatpush1.msra.mxu0 0.0
    %92 = vmatprep.subr.mxu0 0.0
    %93 = vmatpush1.msra.mxu0 0.0
    %94 = vmatprep.subr.mxu0 0.0
    %95 = vmatpush1.msra.mxu0 0.0
    %96 = vmatprep.subr.mxu0 0.0
    %97 = vmatpush1.msra.mxu0 0.0
    %98 = vmatprep.subr.mxu0 0.0
    %99 = vmatpush1.msra.mxu0 0.0
    %100 = vmatprep.subr.mxu0 0.0
    %101 = vmatpush1.msra.mxu0 0.0
    %102 = vmatprep.subr.mxu0 0.0
    %103 = vmatpush1.msra.mxu0 0.0
    %104 = vmatprep.subr.mxu0 0.0
    %105 = vmatpush1.msra.mxu0 0.0
    %106 = vmatprep.subr.mxu0 0.0
    %107 = vmatpush1.msra.mxu0 0.0
    %108 = vmatprep.mubr.f32.mxu0 0.0
    %109 = vmatmul.mubr.f32.gmra.mrb[0].mxu0 %v38
    %v110 = vpop.f32.mrb[0].mxu0
    %v111 = vadd.f32 %v34, %v110
    %v112 = vpop.f32.mrb[0].mxu0
    %113 = vdwg.mxu0
    %v114 = vmax.f32 %v111, 0.0
    %v115 = vld [vmem:[%s3] sm:$0xff]
    %v116 = vld [vmem:[%s3 + $0x8] sm:$0xff]
    %v117 = vld [vmem:[%s3 + $0x10] sm:$0xff]
    %v118 = vld [vmem:[%s3 + $0x18] sm:$0x1]
    %v119 = vld [vmem:[%s4] sm:$0x1]
    %v121 = vlaneseq
    %v122 = vshrl.u32 %v121, 7
    %v123 = vsub.s32 0, %v122
    %v124 = vrot.slane %v119, %v123
    %vm126 = vcmask 203776
    %v128 = vsel %vm126, %v114, 0
    %vm130 = vcmask 1040384
    %v132 = vsel %vm130, %v118, 0
    %134 = vmatprep.subr.mxu0 0.0
    %135 = vmatpush1.msra.mxu0 %v115
    %136 = vmatprep.subr.mxu0 0.0
    %137 = vmatpush1.msra.mxu0 %v116
    %138 = vmatprep.subr.mxu0 0.0
    %139 = vmatpush1.msra.mxu0 %v117
    %140 = vmatprep.subr.mxu0 0.0
    %141 = vmatpush1.msra.mxu0 %v132
    %142 = vmatprep.subr.mxu0 0.0
    %143 = vmatpush1.msra.mxu0 0.0
    %144 = vmatprep.subr.mxu0 0.0
    %145 = vmatpush1.msra.mxu0 0.0
    %146 = vmatprep.subr.mxu0 0.0
    %147 = vmatpush1.msra.mxu0 0.0
    %148 = vmatprep.subr.mxu0 0.0
    %149 = vmatpush1.msra.mxu0 0.0
    %150 = vmatprep.subr.mxu0 0.0
    %151 = vmatpush1.msra.mxu0 0.0
    %152 = vmatprep.subr.mxu0 0.0
    %153 = vmatpush1.msra.mxu0 0.0
    %154 = vmatprep.subr.mxu0 0.0
    %155 = vmatpush1.msra.mxu0 0.0
    %156 = vmatprep.subr.mxu0 0.0
    %157 = vmatpush1.msra.mxu0 0.0
    %158 = vmatprep.subr.mxu0 0.0
    %159 = vmatpush1.msra.mxu0 0.0
    %160 = vmatprep.subr.mxu0 0.0
    %161 = vmatpush1.msra.mxu0 0.0
    %162 = vmatprep.subr.mxu0 0.0
    %163 = vmatpush1.msra.mxu0 0.0
    %164 = vmatprep.subr.mxu0 0.0
    %165 = vmatpush1.msra.mxu0 0.0
    %166 = vmatprep.subr.mxu0 0.0
    %167 = vmatpush1.msra.mxu0 0.0
    %168 = vmatprep.subr.mxu0 0.0
    %169 = vmatpush1.msra.mxu0 0.0
    %170 = vmatprep.subr.mxu0 0.0
    %171 = vmatpush1.msra.mxu0 0.0
    %172 = vmatprep.subr.mxu0 0.0
    %173 = vmatpush1.msra.mxu0 0.0
    %174 = vmatprep.subr.mxu0 0.0
    %175 = vmatpush1.msra.mxu0 0.0
    %176 = vmatprep.subr.mxu0 0.0
    %177 = vmatpush1.msra.mxu0 0.0
    %178 = vmatprep.subr.mxu0 0.0
    %179 = vmatpush1.msra.mxu0 0.0
    %180 = vmatprep.subr.mxu0 0.0
    %181 = vmatpush1.msra.mxu0 0.0
    %182 = vmatprep.subr.mxu0 0.0
    %183 = vmatpush1.msra.mxu0 0.0
    %184 = vmatprep.subr.mxu0 0.0
    %185 = vmatpush1.msra.mxu0 0.0
    %186 = vmatprep.subr.mxu0 0.0
    %187 = vmatpush1.msra.mxu0 0.0
    %188 = vmatprep.subr.mxu0 0.0
    %189 = vmatpush1.msra.mxu0 0.0
    %190 = vmatprep.subr.mxu0 0.0
    %191 = vmatpush1.msra.mxu0 0.0
    %192 = vmatprep.subr.mxu0 0.0
    %193 = vmatpush1.msra.mxu0 0.0
    %194 = vmatprep.subr.mxu0 0.0
    %195 = vmatpush1.msra.mxu0 0.0
    %196 = vmatprep.subr.mxu0 0.0
    %197 = vmatpush1.msra.mxu0 0.0
    %198 = vmatprep.mubr.f32.mxu0 0.0
    %199 = vmatmul.mubr.f32.gmra.mrb[0].mxu0 %v128
    %v200 = vpop.f32.mrb[0].mxu0
    %v201 = vadd.f32 %v124, %v200
    %v202 = vpop.f32.mrb[0].mxu0
    %203 = vdwg.mxu0
    %vm204 = vcmask 64512
    %205 = vst.msk [vmem:[#allocation2] sm:$0xff] %vm204, %v201
    // Predicated region
    $region22: #{tpu_custom_call.1} parent=1 // pred_check
      _
    $region23: #{tpu_custom_call.1} parent=1 // pred_check_branch
      %207 = sbr.rel (0) target = $region25
    $region24: #{tpu_custom_call.1} parent=1 // pred_region
      %s209 = ssub.s32 128, 128
      %210 = vsyncadd [#allocation3], %s209
      %s212 = sshll.u32 [#allocation2], 4
      %s213 = int_to_ptr.vmem [resolvable:$true] %s212
      %215 = dma.vmem_to_hbm [thread:$0]  %s213, 128, %s5, [#allocation3]
    $region25: #{tpu_custom_call.1} parent=1 // pred_fallthru
      _
    // Predicated region
    $region26: #{tpu_custom_call.1} parent=1 // pred_check
      _
    $region27: #{tpu_custom_call.1} parent=1 // pred_check_branch
      %217 = sbr.rel (0) target = $region29
    $region28: #{tpu_custom_call.1} parent=1 // pred_region
      %218 = dma.done [#allocation3], 128
    $region29: #{tpu_custom_call.1} parent=1 // pred_fallthru
      _
    %219 = vsyncpa [#allocation3], 1

</llo_original>
